<compile_context>
chip_gen: v5e
topology: v5e:2x2
jax: 0.10.0
libtpu: 0.0.40
codegen_flags: <defaults>
</compile_context>

<pallas_src>
import jax
import jax.numpy as jnp
from jax.experimental import pallas as pl
from jax.experimental.pallas import tpu as pltpu

# ---------------- model dimensions ----------------
BATCH = 64
IN_DIM = 32        # encoder input features
H1 = 64            # encoder hidden
ENC_DIM = 48       # encoder[-1].out_features (folded away inside the kernel)
H2 = 64            # classifier hidden  (classifier.classifier[0].out_features)
NUM_CLASSES = 10   # classifier output
PAD = 128          # lane-dense padded width for every layer output

# row offsets of the three weights inside the packed bf16 slab (rows, 128 lanes)
W1_OFF = 0
W23_OFF = IN_DIM                 # 32
W4_OFF = IN_DIM + PAD            # 160
W_ROWS = IN_DIM + 2 * PAD        # 288

# advisory cost estimate (single fused call; padded shapes)
_FLOPS = 2 * BATCH * (IN_DIM * PAD + PAD * PAD + PAD * PAD)
_BYTES = (BATCH * IN_DIM * 4       # x (f32, cast in-kernel)
          + W_ROWS * PAD * 2       # weight slab (bf16)
          + 3 * PAD * 4            # bias slab (f32)
          + BATCH * PAD * 4)       # padded output (f32)


def joined_mlp_kernel(x_ref, w_ref, b_ref, o_ref):
    # x: (B, IN_DIM) f32 -> bf16 in-kernel (VPU cast, hidden under the MXU)
    x = x_ref[...].astype(jnp.bfloat16)
    b = b_ref[...]                                     # (3, 128) f32 bias slab

    # encoder: Linear(IN_DIM, H1 padded to 128) -> ReLU   (f32 bias + ReLU, then cast)
    h1 = jnp.dot(x, w_ref[W1_OFF:W1_OFF + IN_DIM, :],
                 preferred_element_type=jnp.float32) + b[0:1, :]
    h1 = jnp.maximum(h1, 0.0)

    # folded (encoder Linear(H1,ENC) o classifier Linear(ENC,H2)), padded to 128 -> ReLU
    h2 = jnp.dot(h1.astype(jnp.bfloat16), w_ref[W23_OFF:W23_OFF + PAD, :],
                 preferred_element_type=jnp.float32) + b[1:2, :]
    h2 = jnp.maximum(h2, 0.0)

    # classifier final Linear (output padded to 128 lanes -> unmasked lane-dense store)
    out = jnp.dot(h2.astype(jnp.bfloat16), w_ref[W4_OFF:W4_OFF + PAD, :],
                  preferred_element_type=jnp.float32) + b[2:3, :]
    o_ref[...] = out


def prepare_kernel_params(params):
    """One-time (load-time) prep: fold w2/w3, zero-pad all layers to 128 lanes,
    pack weights into one bf16 slab and biases into one f32 slab."""
    (w1, b1, w2, b2, w3, b3, w4, b4) = params
    w23 = w2 @ w3                          # (H1, H2) folded in f32
    b23 = b2 @ w3 + b3                     # (1, H2)

    w1p = jnp.zeros((IN_DIM, PAD), jnp.float32).at[:, :H1].set(w1)
    w23p = jnp.zeros((PAD, PAD), jnp.float32).at[:H1, :H2].set(w23)
    w4p = jnp.zeros((PAD, PAD), jnp.float32).at[:H2, :NUM_CLASSES].set(w4)
    w_slab = jnp.concatenate([w1p, w23p, w4p], axis=0).astype(jnp.bfloat16)  # (288,128)

    b_slab = jnp.zeros((3, PAD), jnp.float32)
    b_slab = b_slab.at[0, :H1].set(b1[0])
    b_slab = b_slab.at[1, :H2].set(b23[0])
    b_slab = b_slab.at[2, :NUM_CLASSES].set(b4[0])
    return w_slab, b_slab


@jax.jit
def joined_model_forward(x, w_slab, b_slab):
    """x: (B, IN_DIM) f32, prepacked params -> (B, NUM_CLASSES) f32."""
    B = x.shape[0]
    vmem = lambda: pl.BlockSpec(memory_space=pltpu.MemorySpace.VMEM)

    out_padded = pl.pallas_call(
        joined_mlp_kernel,
        out_shape=jax.ShapeDtypeStruct((B, PAD), jnp.float32),
        in_specs=[vmem(), vmem(), vmem()],
        out_specs=vmem(),
        cost_estimate=pl.CostEstimate(
            flops=_FLOPS, transcendentals=0, bytes_accessed=_BYTES),
    )(x, w_slab, b_slab)

    # padded logit columns 10..127 are exactly 0.0; always slice before consuming.
    return out_padded[:, :NUM_CLASSES]


def init_params(key):
    """Deterministic parameter init (Kaiming-ish uniform like nn.Linear), f32."""
    def linear(k, fan_in, fan_out):
        kw, kb = jax.random.split(k)
        bound = 1.0 / jnp.sqrt(fan_in)
        w = jax.random.uniform(kw, (fan_in, fan_out), jnp.float32, -bound, bound)
        b = jax.random.uniform(kb, (1, fan_out), jnp.float32, -bound, bound)
        return w, b

    k1, k2, k3, k4 = jax.random.split(key, 4)
    w1, b1 = linear(k1, IN_DIM, H1)        # encoder[0]   (frozen in torch; inference here)
    w2, b2 = linear(k2, H1, ENC_DIM)       # encoder[-1]
    w3, b3 = linear(k3, ENC_DIM, H2)       # classifier.classifier[0] (rebuilt to ENC_DIM in)
    w4, b4 = linear(k4, H2, NUM_CLASSES)   # classifier.classifier[-1]
    return (w1, b1, w2, b2, w3, b3, w4, b4)


def reference_forward(x, params):
    """Unfolded f32 reference matching the original PyTorch forward (Sequential branch)."""
    (w1, b1, w2, b2, w3, b3, w4, b4) = params
    h1 = jnp.maximum(x @ w1 + b1, 0.0)
    enc = h1 @ w2 + b2
    h2 = jnp.maximum(enc @ w3 + b3, 0.0)
    return h2 @ w4 + b4


if __name__ == "__main__":
    key = jax.random.PRNGKey(0)
    kx, kp = jax.random.split(key)
    x = jax.random.normal(kx, (BATCH, IN_DIM), jnp.float32)
    params = init_params(kp)

    # one-time, load-time parameter packing (hoisted out of the per-call path)
    w_slab, b_slab = prepare_kernel_params(params)
    w_slab, b_slab = jax.block_until_ready((w_slab, b_slab))

    out = joined_model_forward(x, w_slab, b_slab)
    out = jax.block_until_ready(out)

    ref = reference_forward(x, params)
    assert out.shape == (BATCH, NUM_CLASSES)
    # bf16 weights/activations (and folded-then-quantized w23) vs f32 reference
    assert jnp.allclose(out, ref, atol=3e-2, rtol=3e-2), \
        f"max abs diff {jnp.max(jnp.abs(out - ref))}"

    print("KERNEL_OK")
</pallas_src>

<mosaic_0001>
module attributes {stable_mosaic.version = 11 : i64} {
  func.func @joined_mlp_kernel(%arg0: memref<64x32xf32, #tpu.memory_space<vmem>>, %arg1: memref<288x128xbf16, #tpu.memory_space<vmem>>, %arg2: memref<3x128xf32, #tpu.memory_space<vmem>>, %arg3: memref<64x128xf32, #tpu.memory_space<vmem>>) attributes {dimension_semantics = [], scalar_prefetch = 0 : i64, scratch_operands = 0 : i64, tpu.core_type = #tpu.core_type<tc>} {
    %c0 = arith.constant 0 : index
    %c0_0 = arith.constant 0 : index
    %0 = vector.load %arg0[%c0, %c0_0] : memref<64x32xf32, #tpu.memory_space<vmem>>, vector<64x32xf32>
    %1 = arith.truncf %0 : vector<64x32xf32> to vector<64x32xbf16>
    %c0_1 = arith.constant 0 : index
    %c0_2 = arith.constant 0 : index
    %2 = vector.load %arg2[%c0_1, %c0_2] : memref<3x128xf32, #tpu.memory_space<vmem>>, vector<3x128xf32>
    %c0_3 = arith.constant 0 : index
    %c0_4 = arith.constant 0 : index
    %3 = vector.load %arg1[%c0_3, %c0_4] : memref<288x128xbf16, #tpu.memory_space<vmem>>, vector<32x128xbf16>
    %cst = arith.constant dense<0.000000e+00> : vector<64x128xf32>
    %4 = tpu.matmul %1, %3, %cst {dimension_numbers = #tpu.dot_dimension_numbers<[1], [0], [0], [1], [0, 0, 1, 1], [], []>} : vector<64x32xbf16>, vector<32x128xbf16>, vector<64x128xf32> -> vector<64x128xf32>
    %5 = vector.extract_strided_slice %2 {offsets = [0, 0], sizes = [1, 128], strides = [1, 1]} : vector<3x128xf32> to vector<1x128xf32>
    %6 = vector.broadcast %5 : vector<1x128xf32> to vector<64x128xf32>
    %7 = arith.addf %4, %6 : vector<64x128xf32>
    %cst_5 = arith.constant 0.000000e+00 : f32
    %8 = vector.broadcast %cst_5 : f32 to vector<64x128xf32>
    %9 = arith.maximumf %7, %8 : vector<64x128xf32>
    %10 = arith.truncf %9 : vector<64x128xf32> to vector<64x128xbf16>
    %c32 = arith.constant 32 : index
    %c0_6 = arith.constant 0 : index
    %11 = vector.load %arg1[%c32, %c0_6] : memref<288x128xbf16, #tpu.memory_space<vmem>>, vector<128x128xbf16>
    %cst_7 = arith.constant dense<0.000000e+00> : vector<64x128xf32>
    %12 = tpu.matmul %10, %11, %cst_7 {dimension_numbers = #tpu.dot_dimension_numbers<[1], [0], [0], [1], [0, 0, 1, 1], [], []>} : vector<64x128xbf16>, vector<128x128xbf16>, vector<64x128xf32> -> vector<64x128xf32>
    %13 = vector.extract_strided_slice %2 {offsets = [1, 0], sizes = [1, 128], strides = [1, 1]} : vector<3x128xf32> to vector<1x128xf32>
    %14 = vector.broadcast %13 : vector<1x128xf32> to vector<64x128xf32>
    %15 = arith.addf %12, %14 : vector<64x128xf32>
    %cst_8 = arith.constant 0.000000e+00 : f32
    %16 = vector.broadcast %cst_8 : f32 to vector<64x128xf32>
    %17 = arith.maximumf %15, %16 : vector<64x128xf32>
    %18 = arith.truncf %17 : vector<64x128xf32> to vector<64x128xbf16>
    %c160 = arith.constant 160 : index
    %c0_9 = arith.constant 0 : index
    %19 = vector.load %arg1[%c160, %c0_9] : memref<288x128xbf16, #tpu.memory_space<vmem>>, vector<128x128xbf16>
    %cst_10 = arith.constant dense<0.000000e+00> : vector<64x128xf32>
    %20 = tpu.matmul %18, %19, %cst_10 {dimension_numbers = #tpu.dot_dimension_numbers<[1], [0], [0], [1], [0, 0, 1, 1], [], []>} : vector<64x128xbf16>, vector<128x128xbf16>, vector<64x128xf32> -> vector<64x128xf32>
    %21 = vector.extract_strided_slice %2 {offsets = [2, 0], sizes = [1, 128], strides = [1, 1]} : vector<3x128xf32> to vector<1x128xf32>
    %22 = vector.broadcast %21 : vector<1x128xf32> to vector<64x128xf32>
    %23 = arith.addf %20, %22 : vector<64x128xf32>
    %c0_11 = arith.constant 0 : index
    %c0_12 = arith.constant 0 : index
    %24 = vector.load %arg3[%c0_11, %c0_12] : memref<64x128xf32, #tpu.memory_space<vmem>>, vector<64x128xf32>
    tpu.vector_store %arg3[%c0_11, %c0_12], %23 {strides = array<i32>} : memref<64x128xf32, #tpu.memory_space<vmem>>, vector<64x128xf32>,
    return
  }
}

</mosaic_0001>

<llo_original>
// kernel: joined_model_forward.1
$region0: #{joined_model_forward.1}
  #allocation0 [shape = 'u32[]', space=smem, size = 0x4, offset = 0x4, fixed_abs, tag = 'smem constant byte address 0x4 - core index']
  #allocation1 [shape = 'u32[72,128]{1,0:T(1,128)}', space=vmem, size = 0x9000, scoped, tag = 'internal scratch']
  %s0 = inlined_call_operand.vmem [shape: f32[64,32], index: 0, kind: input, shape index: {}]
  %s1 = inlined_call_operand.hbm [shape: bf16[288,128], index: 1, kind: input, shape index: {}]
  %s2 = inlined_call_operand.vmem [shape: f32[3,128], index: 2, kind: input, shape index: {}]
  %s3 = inlined_call_operand.vmem [shape: f32[64,128], index: 3, kind: output, shape index: {}]
  %s4 = sld [smem:[#allocation0]]
  $region26: #{joined_model_forward.1} parent=0
    _
  %s6 = ssub.s32 1, %s4
  %s7 = scalar_select 0, %s6, %s4
  $region1: #{joined_model_forward.1} parent=0
    #allocation2 [shape = 'u8[73728]{0}', space=vmem, size = 0x12000, scoped, tag = 'input window, operand 1, single buffered']
    #allocation3 [shape = 's32[1]{0}', space=sflag, size = 0x4, scoped, tag = 'scoped memory for joined_model_forward.1']
    %8 = vsyncpa [#allocation3], 0
    // Predicated region
    $region2: #{joined_model_forward.1} parent=1 // pred_check
      _
    $region3: #{joined_model_forward.1} parent=1 // pred_check_branch
      %10 = sbr.rel (0) target = $region5
    $region4: #{joined_model_forward.1} parent=1 // pred_region
      _
    $region5: #{joined_model_forward.1} parent=1 // pred_fallthru
      _
    // Predicated region
    $region6: #{joined_model_forward.1} parent=1 // pred_check
      _
    $region7: #{joined_model_forward.1} parent=1 // pred_check_branch
      %12 = sbr.rel (0) target = $region9
    $region8: #{joined_model_forward.1} parent=1 // pred_region
      %14 = vsyncadd [#allocation3], 0
      %s15 = sshll.u32 %s1, 4
      %s16 = int_to_ptr.hbm [resolvable:$true] %s15
      %s17 = sshll.u32 [#allocation2], 4
      %s18 = int_to_ptr.vmem [resolvable:$true] %s17
      %23 = dma.hbm_to_vmem [thread:$0]  %s16, 2304, %s18, [#allocation3], 64, 64, 4
    $region9: #{joined_model_forward.1} parent=1 // pred_fallthru
      _
    // Predicated region
    $region10: #{joined_model_forward.1} parent=1 // pred_check
      _
    $region11: #{joined_model_forward.1} parent=1 // pred_check_branch
      %25 = sbr.rel (0) target = $region13
    $region12: #{joined_model_forward.1} parent=1 // pred_region
      _
    $region13: #{joined_model_forward.1} parent=1 // pred_fallthru
      _
    // Predicated region
    $region14: #{joined_model_forward.1} parent=1 // pred_check
      _
    $region15: #{joined_model_forward.1} parent=1 // pred_check_branch
      %27 = sbr.rel (0) target = $region17
    $region16: #{joined_model_forward.1} parent=1 // pred_region
      %29 = dma.done [#allocation3], 2304
    $region17: #{joined_model_forward.1} parent=1 // pred_fallthru
      _
    %v31 = vld [vmem:[%s0] sm:$0xff]
    %v32 = vld [vmem:[%s0 + $0x8] sm:$0xff]
    %v33 = vld [vmem:[%s0 + $0x10] sm:$0xff]
    %v34 = vld [vmem:[%s0 + $0x18] sm:$0xff]
    %v35 = vld [vmem:[%s0 + $0x20] sm:$0xff]
    %v36 = vld [vmem:[%s0 + $0x28] sm:$0xff]
    %v37 = vld [vmem:[%s0 + $0x30] sm:$0xff]
    %v38 = vld [vmem:[%s0 + $0x38] sm:$0xff]
    %v39 = vpack.c.bf16 %v32, %v31
    %v40 = vpack.c.bf16 %v34, %v33
    %v41 = vpack.c.bf16 %v36, %v35
    %v42 = vpack.c.bf16 %v38, %v37
    %v43 = vld [vmem:[%s2] sm:$0x7]
    %v44 = vld [vmem:[#allocation2] sm:$0xf]
    %v45 = vld [vmem:[#allocation2 + $0x4] sm:$0xf]
    %v46 = vld [vmem:[#allocation2 + $0x8] sm:$0xf]
    %v47 = vld [vmem:[#allocation2 + $0xc] sm:$0xf]
    %v48 = vperm.slane %v43, 0
    %v53 = vunpack.c.l.b16 %v44
    %v54 = vunpack.c.l.b16 %v45
    %v55 = vunpack.c.l.b16 %v46
    %v56 = vunpack.c.l.b16 %v47
    %v57 = vpack.c.b16 %v54, %v53
    %v58 = vpack.c.b16 %v56, %v55
    %vm61 = vcmask 261120
    %v63 = vsel %vm61, %v39, 0
    %v66 = vsel %vm61, %v40, 0
    %v69 = vsel %vm61, %v41, 0
    %v72 = vsel %vm61, %v42, 0
    %74 = vmatpush.bf16.msra.mxu0 0
    %75 = vmatpush.bf16.msra.mxu0 0
    %76 = vmatpush.bf16.msra.mxu0 0
    %77 = vmatpush.bf16.msra.mxu0 0
    %78 = vmatpush.bf16.msra.mxu0 0
    %79 = vmatpush.bf16.msra.mxu0 0
    %80 = vmatpush.bf16.msra.mxu0 %v58
    %81 = vmatpush.bf16.msra.mxu0 %v57
    %82 = vmatmul.bf16.gmra.mxu0 %v63
    %v83 = vpop.f32.mrf.mxu0
    %v84 = vadd.f32 %v48, %v83
    %v85 = vpop.f32.mrf.mxu0
    %v86 = vadd.f32 %v48, %v85
    %87 = vmatmul.bf16.gmra.mxu0 %v66
    %v88 = vpop.f32.mrf.mxu0
    %v89 = vadd.f32 %v48, %v88
    %v90 = vpop.f32.mrf.mxu0
    %v91 = vadd.f32 %v48, %v90
    %92 = vmatmul.bf16.gmra.mxu0 %v69
    %v93 = vpop.f32.mrf.mxu0
    %v94 = vadd.f32 %v48, %v93
    %v95 = vpop.f32.mrf.mxu0
    %v96 = vadd.f32 %v48, %v95
    %97 = vmatmul.bf16.gmra.mxu0 %v72
    %v98 = vpop.f32.mrf.mxu0
    %v99 = vadd.f32 %v48, %v98
    %v100 = vpop.f32.mrf.mxu0
    %v101 = vadd.f32 %v48, %v100
    %102 = vdwg.mxu0
    %v103 = vmax.f32 %v84, 0.0
    %v104 = vmax.f32 %v86, 0.0
    %v105 = vmax.f32 %v89, 0.0
    %v106 = vmax.f32 %v91, 0.0
    %v107 = vmax.f32 %v94, 0.0
    %v108 = vmax.f32 %v96, 0.0
    %v109 = vmax.f32 %v99, 0.0
    %v110 = vmax.f32 %v101, 0.0
    %v111 = vpack.c.bf16 %v104, %v103
    %v112 = vpack.c.bf16 %v106, %v105
    %v113 = vpack.c.bf16 %v108, %v107
    %v114 = vpack.c.bf16 %v110, %v109
    %v115 = vld [vmem:[#allocation2 + $0x10] sm:$0xf]
    %v116 = vld [vmem:[#allocation2 + $0x14] sm:$0xf]
    %v117 = vld [vmem:[#allocation2 + $0x18] sm:$0xf]
    %v118 = vld [vmem:[#allocation2 + $0x1c] sm:$0xf]
    %v119 = vld [vmem:[#allocation2 + $0x20] sm:$0xf]
    %v120 = vld [vmem:[#allocation2 + $0x24] sm:$0xf]
    %v121 = vld [vmem:[#allocation2 + $0x28] sm:$0xf]
    %v122 = vld [vmem:[#allocation2 + $0x2c] sm:$0xf]
    %v123 = vld [vmem:[#allocation2 + $0x30] sm:$0xf]
    %v124 = vld [vmem:[#allocation2 + $0x34] sm:$0xf]
    %v125 = vld [vmem:[#allocation2 + $0x38] sm:$0xf]
    %v126 = vld [vmem:[#allocation2 + $0x3c] sm:$0xf]
    %v127 = vld [vmem:[#allocation2 + $0x40] sm:$0xf]
    %v128 = vld [vmem:[#allocation2 + $0x44] sm:$0xf]
    %v129 = vld [vmem:[#allocation2 + $0x48] sm:$0xf]
    %v130 = vld [vmem:[#allocation2 + $0x4c] sm:$0xf]
    %v131 = vperm.slane %v43, 1
    %v148 = vunpack.c.l.b16 %v115
    %v149 = vunpack.c.l.b16 %v116
    %v150 = vunpack.c.l.b16 %v117
    %v151 = vunpack.c.l.b16 %v118
    %v152 = vunpack.c.l.b16 %v119
    %v153 = vunpack.c.l.b16 %v120
    %v154 = vunpack.c.l.b16 %v121
    %v155 = vunpack.c.l.b16 %v122
    %v156 = vunpack.c.l.b16 %v123
    %v157 = vunpack.c.l.b16 %v124
    %v158 = vunpack.c.l.b16 %v125
    %v159 = vunpack.c.l.b16 %v126
    %v160 = vunpack.c.l.b16 %v127
    %v161 = vunpack.c.l.b16 %v128
    %v162 = vunpack.c.l.b16 %v129
    %v163 = vunpack.c.l.b16 %v130
    %v164 = vpack.c.b16 %v149, %v148
    %v165 = vpack.c.b16 %v151, %v150
    %v166 = vpack.c.b16 %v153, %v152
    %v167 = vpack.c.b16 %v155, %v154
    %v168 = vpack.c.b16 %v157, %v156
    %v169 = vpack.c.b16 %v159, %v158
    %v170 = vpack.c.b16 %v161, %v160
    %v171 = vpack.c.b16 %v163, %v162
    %180 = vmatpush.bf16.msra.mxu0 %v171
    %181 = vmatpush.bf16.msra.mxu0 %v170
    %182 = vmatpush.bf16.msra.mxu0 %v169
    %183 = vmatpush.bf16.msra.mxu0 %v168
    %184 = vmatpush.bf16.msra.mxu0 %v167
    %185 = vmatpush.bf16.msra.mxu0 %v166
    %186 = vmatpush.bf16.msra.mxu0 %v165
    %187 = vmatpush.bf16.msra.mxu0 %v164
    %188 = vmatmul.bf16.gmra.mxu0 %v111
    %v189 = vpop.f32.mrf.mxu0
    %v190 = vadd.f32 %v131, %v189
    %v191 = vpop.f32.mrf.mxu0
    %v192 = vadd.f32 %v131, %v191
    %193 = vmatmul.bf16.gmra.mxu0 %v112
    %v194 = vpop.f32.mrf.mxu0
    %v195 = vadd.f32 %v131, %v194
    %v196 = vpop.f32.mrf.mxu0
    %v197 = vadd.f32 %v131, %v196
    %198 = vmatmul.bf16.gmra.mxu0 %v113
    %v199 = vpop.f32.mrf.mxu0
    %v200 = vadd.f32 %v131, %v199
    %v201 = vpop.f32.mrf.mxu0
    %v202 = vadd.f32 %v131, %v201
    %203 = vmatmul.bf16.gmra.mxu0 %v114
    %v204 = vpop.f32.mrf.mxu0
    %v205 = vadd.f32 %v131, %v204
    %v206 = vpop.f32.mrf.mxu0
    %v207 = vadd.f32 %v131, %v206
    %208 = vdwg.mxu0
    %v209 = vmax.f32 %v190, 0.0
    %v210 = vmax.f32 %v192, 0.0
    %v211 = vmax.f32 %v195, 0.0
    %v212 = vmax.f32 %v197, 0.0
    %v213 = vmax.f32 %v200, 0.0
    %v214 = vmax.f32 %v202, 0.0
    %v215 = vmax.f32 %v205, 0.0
    %v216 = vmax.f32 %v207, 0.0
    %v217 = vpack.c.bf16 %v210, %v209
    %v218 = vpack.c.bf16 %v212, %v211
    %v219 = vpack.c.bf16 %v214, %v213
    %v220 = vpack.c.bf16 %v216, %v215
    %v221 = vld [vmem:[#allocation2 + $0x50] sm:$0xf]
    %v222 = vld [vmem:[#allocation2 + $0x54] sm:$0xf]
    %v223 = vld [vmem:[#allocation2 + $0x58] sm:$0xf]
    %v224 = vld [vmem:[#allocation2 + $0x5c] sm:$0xf]
    %v225 = vld [vmem:[#allocation2 + $0x60] sm:$0xf]
    %v226 = vld [vmem:[#allocation2 + $0x64] sm:$0xf]
    %v227 = vld [vmem:[#allocation2 + $0x68] sm:$0xf]
    %v228 = vld [vmem:[#allocation2 + $0x6c] sm:$0xf]
    %v229 = vld [vmem:[#allocation2 + $0x70] sm:$0xf]
    %v230 = vld [vmem:[#allocation2 + $0x74] sm:$0xf]
    %v231 = vld [vmem:[#allocation2 + $0x78] sm:$0xf]
    %v232 = vld [vmem:[#allocation2 + $0x7c] sm:$0xf]
    %v233 = vld [vmem:[#allocation2 + $0x80] sm:$0xf]
    %v234 = vld [vmem:[#allocation2 + $0x84] sm:$0xf]
    %v235 = vld [vmem:[#allocation2 + $0x88] sm:$0xf]
    %v236 = vld [vmem:[#allocation2 + $0x8c] sm:$0xf]
    %v237 = vperm.slane %v43, 2
    %v254 = vunpack.c.l.b16 %v221
    %v255 = vunpack.c.l.b16 %v222
    %v256 = vunpack.c.l.b16 %v223
    %v257 = vunpack.c.l.b16 %v224
    %v258 = vunpack.c.l.b16 %v225
    %v259 = vunpack.c.l.b16 %v226
    %v260 = vunpack.c.l.b16 %v227
    %v261 = vunpack.c.l.b16 %v228
    %v262 = vunpack.c.l.b16 %v229
    %v263 = vunpack.c.l.b16 %v230
    %v264 = vunpack.c.l.b16 %v231
    %v265 = vunpack.c.l.b16 %v232
    %v266 = vunpack.c.l.b16 %v233
    %v267 = vunpack.c.l.b16 %v234
    %v268 = vunpack.c.l.b16 %v235
    %v269 = vunpack.c.l.b16 %v236
    %v270 = vpack.c.b16 %v255, %v254
    %v271 = vpack.c.b16 %v257, %v256
    %v272 = vpack.c.b16 %v259, %v258
    %v273 = vpack.c.b16 %v261, %v260
    %v274 = vpack.c.b16 %v263, %v262
    %v275 = vpack.c.b16 %v265, %v264
    %v276 = vpack.c.b16 %v267, %v266
    %v277 = vpack.c.b16 %v269, %v268
    %286 = vmatpush.bf16.msra.mxu0 %v277
    %287 = vmatpush.bf16.msra.mxu0 %v276
    %288 = vmatpush.bf16.msra.mxu0 %v275
    %289 = vmatpush.bf16.msra.mxu0 %v274
    %290 = vmatpush.bf16.msra.mxu0 %v273
    %291 = vmatpush.bf16.msra.mxu0 %v272
    %292 = vmatpush.bf16.msra.mxu0 %v271
    %293 = vmatpush.bf16.msra.mxu0 %v270
    %294 = vmatmul.bf16.gmra.mxu0 %v217
    %v295 = vpop.f32.mrf.mxu0
    %v296 = vadd.f32 %v237, %v295
    %v297 = vpop.f32.mrf.mxu0
    %v298 = vadd.f32 %v237, %v297
    %299 = vmatmul.bf16.gmra.mxu0 %v218
    %v300 = vpop.f32.mrf.mxu0
    %v301 = vadd.f32 %v237, %v300
    %v302 = vpop.f32.mrf.mxu0
    %v303 = vadd.f32 %v237, %v302
    %304 = vmatmul.bf16.gmra.mxu0 %v219
    %v305 = vpop.f32.mrf.mxu0
    %v306 = vadd.f32 %v237, %v305
    %v307 = vpop.f32.mrf.mxu0
    %v308 = vadd.f32 %v237, %v307
    %309 = vmatmul.bf16.gmra.mxu0 %v220
    %v310 = vpop.f32.mrf.mxu0
    %v311 = vadd.f32 %v237, %v310
    %v312 = vpop.f32.mrf.mxu0
    %v313 = vadd.f32 %v237, %v312
    %314 = vdwg.mxu0
    %315 = vst [vmem:[%s3] sm:$0xff] %v296
    %316 = vst [vmem:[%s3 + $0x8] sm:$0xff] %v298
    %317 = vst [vmem:[%s3 + $0x10] sm:$0xff] %v301
    %318 = vst [vmem:[%s3 + $0x18] sm:$0xff] %v303
    %319 = vst [vmem:[%s3 + $0x20] sm:$0xff] %v306
    %320 = vst [vmem:[%s3 + $0x28] sm:$0xff] %v308
    %321 = vst [vmem:[%s3 + $0x30] sm:$0xff] %v311
    %322 = vst [vmem:[%s3 + $0x38] sm:$0xff] %v313
    // Predicated region
    $region18: #{joined_model_forward.1} parent=1 // pred_check
      _
    $region19: #{joined_model_forward.1} parent=1 // pred_check_branch
      %324 = sbr.rel (0) target = $region21
    $region20: #{joined_model_forward.1} parent=1 // pred_region
      _
    $region21: #{joined_model_forward.1} parent=1 // pred_fallthru
      _
    // Predicated region
    $region22: #{joined_model_forward.1} parent=1 // pred_check
      _
    $region23: #{joined_model_forward.1} parent=1 // pred_check_branch
      %326 = sbr.rel (0) target = $region25
    $region24: #{joined_model_forward.1} parent=1 // pred_region
      _
    $region25: #{joined_model_forward.1} parent=1 // pred_fallthru
      _
    %327 = vsyncpa [#allocation3], 1

</llo_original>
